<compile_context>
chip_gen: v6e
topology: v6e:2x2x1
jax: 0.10.0
libtpu: 0.0.40
codegen_flags: <defaults>
</compile_context>

<pallas_src>
import functools
import math

import jax
import jax.numpy as jnp
import numpy as np
from jax.experimental import pallas as pl
from jax.experimental.pallas import tpu as pltpu


def motion_encoder_kernel(*refs, layer_num, hidden_size):
    """Single-timestep multi-layer LSTM over all (batch x pedestrian) rows.

    refs (layer_num > 1):
      x      : (M, Din)       layer-0 input, M = batch * pedestrian_num
      h0, c0 : (L, M, H)      previous hidden / cell state (kernel layout)
      w_ih0  : (Din, 4H)      layer-0 input weights,   gate order [i, f, o, g]
      w_ihr  : (L-1, H, 4H)   layers>0 input weights,  gate order [i, f, o, g]
      w_hh   : (L, H, 4H)     recurrent weights,       gate order [i, f, o, g]
      b      : (L, 1, 4H)     b_ih + b_hh,             gate order [i, f, o, g]
      hn, cn : (L, M, H)      next hidden / cell state (aliased onto h0 / c0)
    (layer_num == 1: same, without w_ihr.)
    """
    H = hidden_size
    L = layer_num
    if L > 1:
        (x_ref, h0_ref, c0_ref, w_ih0_ref, w_ihr_ref, w_hh_ref, b_ref,
         hn_ref, cn_ref) = refs
    else:
        (x_ref, h0_ref, c0_ref, w_ih0_ref, w_hh_ref, b_ref,
         hn_ref, cn_ref) = refs
        w_ihr_ref = None

    # Read the full previous state before any (HBM-aliased) output writes.
    h0 = h0_ref[...]                                    # (L, M, H)
    c0 = c0_ref[...]                                    # (L, M, H)

    # Recurrent half of every layer's pre-activation, bias folded in.  These L
    # dots are mutually independent and sit OFF the serial layer chain.
    r = [jnp.dot(h0[l], w_hh_ref[l], preferred_element_type=jnp.float32)
         + b_ref[l]
         for l in range(L)]                             # each (M, 4H)

    inp = x_ref[...]                                    # (M, Din)
    for l in range(L):                                  # static -> unrolled
        w_in = w_ih0_ref[...] if l == 0 else w_ihr_ref[l - 1]
        gates = jnp.dot(inp, w_in, preferred_element_type=jnp.float32) + r[l]
        sig = jax.nn.sigmoid(gates[:, :3 * H])          # i, f, o: one EUP pass
        g_g = jnp.tanh(gates[:, 3 * H:])                # g: one tanh pass
        i_g = sig[:, 0 * H:1 * H]
        f_g = sig[:, 1 * H:2 * H]
        o_g = sig[:, 2 * H:3 * H]
        c_new = f_g * c0[l] + i_g * g_g
        h_new = o_g * jnp.tanh(c_new)
        hn_ref[l] = h_new
        cn_ref[l] = c_new
        inp = h_new


def make_motion_encoder(pedestrian_num, layer_num, input_size, hidden_size):
    """Returns a jitted step: forward(data, h, c, w_ih0, w_hh, b, w_ihr)."""
    assert layer_num >= 1, "MotionEncoder requires at least one LSTM layer"
    P, L, H = pedestrian_num, layer_num, hidden_size
    kernel = functools.partial(motion_encoder_kernel,
                               layer_num=L, hidden_size=H)
    vmem = pl.BlockSpec(memory_space=pltpu.MemorySpace.VMEM)

    def forward(data, h, c, w_ih0, w_hh, b, w_ihr=None):
        """data: (B, P, input_size); h, c: (L, B*P, H) with row order b*P + p.

        Returns (output, hn, cn):
          output : (B, P, H)    == torch.stack(output_list, 1)  (seq_len == 1)
          hn, cn : (L, B*P, H)  next state in kernel layout (aliased onto h, c)
        """
        B = data.shape[0]
        M = B * P
        x = data.reshape(M, input_size)        # pure view: row m = b*P + p
        args = (x, h, c, w_ih0) + ((w_ihr,) if L > 1 else ()) + (w_hh, b)
        hn, cn = pl.pallas_call(
            kernel,
            out_shape=(jax.ShapeDtypeStruct((L, M, H), jnp.float32),
                       jax.ShapeDtypeStruct((L, M, H), jnp.float32)),
            in_specs=[vmem] * len(args),
            out_specs=(vmem, vmem),
            input_output_aliases={1: 0, 2: 1},  # h -> hn, c -> cn (in place)
        )(*args)
        # seq_len == 1, so the LSTM "output" is the last layer's next hidden.
        output = hn[L - 1].reshape(B, P, H)
        return output, hn, cn

    return jax.jit(forward, donate_argnums=(1, 2))


# ---------------- parameter init / packing (plain-JAX glue) ----------------

def init_lstm_params(key, layer_num, input_size, hidden_size):
    """Deterministic nn.LSTM-style init: U(-1/sqrt(H), 1/sqrt(H))."""
    k = 1.0 / math.sqrt(hidden_size)
    params = []
    for l in range(layer_num):
        in_dim = input_size if l == 0 else hidden_size
        key, k1, k2, k3, k4 = jax.random.split(key, 5)
        w_ih = jax.random.uniform(k1, (4 * hidden_size, in_dim), jnp.float32, -k, k)
        w_hh = jax.random.uniform(k2, (4 * hidden_size, hidden_size), jnp.float32, -k, k)
        b_ih = jax.random.uniform(k3, (4 * hidden_size,), jnp.float32, -k, k)
        b_hh = jax.random.uniform(k4, (4 * hidden_size,), jnp.float32, -k, k)
        params.append((w_ih, w_hh, b_ih, b_hh))
    return params


def _reorder_gates(w, hidden_size):
    """PyTorch gate block order [i, f, g, o] -> kernel order [i, f, o, g] (axis 0)."""
    H = hidden_size
    return jnp.concatenate([w[0:H], w[H:2 * H], w[3 * H:4 * H], w[2 * H:3 * H]], axis=0)


def pack_params(params, hidden_size):
    """Pack PyTorch-layout LSTM params into the kernel's weight tensors.

    Returns:
      w_ih0 : (Din, 4H)      layer-0 input weights (transposed, gates reordered)
      w_ihr : (L-1, H, 4H)   layers>0 input weights, or None if L == 1
      w_hh  : (L, H, 4H)     recurrent weights
      b     : (L, 1, 4H)     b_ih + b_hh
    """
    H = hidden_size
    w_ih0 = _reorder_gates(params[0][0], H).T
    w_hh = jnp.stack([_reorder_gates(p[1], H).T for p in params])
    b = jnp.stack([_reorder_gates((p[2] + p[3])[:, None], H)[:, 0][None, :]
                   for p in params])
    w_ihr = (jnp.stack([_reorder_gates(p[0], H).T for p in params[1:]])
             if len(params) > 1 else None)
    return w_ih0, w_ihr, w_hh, b


# ---------------- pure-JAX reference (mirrors the PyTorch forward) ----------------

def motion_encoder_ref(data, h0, c0, params):
    """h0 / c0 in the PyTorch per-pedestrian layout: (P, L, B, H)."""
    B, P, _ = data.shape
    L = len(params)
    hp = jax.lax.Precision.HIGHEST
    outs, hns, cns = [], [], []
    for p in range(P):
        inp = data[:, p]
        hn_l, cn_l = [], []
        for l in range(L):
            w_ih, w_hh, b_ih, b_hh = params[l]
            H = w_hh.shape[1]
            gates = (jnp.dot(inp, w_ih.T, precision=hp) + b_ih
                     + jnp.dot(h0[p, l], w_hh.T, precision=hp) + b_hh)
            i = jax.nn.sigmoid(gates[:, :H])
            f = jax.nn.sigmoid(gates[:, H:2 * H])
            g = jnp.tanh(gates[:, 2 * H:3 * H])
            o = jax.nn.sigmoid(gates[:, 3 * H:])
            c_new = f * c0[p, l] + i * g
            h_new = o * jnp.tanh(c_new)
            hn_l.append(h_new)
            cn_l.append(c_new)
            inp = h_new
        outs.append(h_new)
        hns.append(jnp.stack(hn_l))
        cns.append(jnp.stack(cn_l))
    return jnp.stack(outs, axis=1), jnp.stack(hns), jnp.stack(cns)


if __name__ == "__main__":
    pedestrian_num, layer_num = 4, 2
    batch, input_size, hidden_size = 2, 16, 32
    P, L, B, H = pedestrian_num, layer_num, batch, hidden_size
    M = B * P

    key = jax.random.PRNGKey(0)
    k_data, k_h, k_c, k_param = jax.random.split(key, 4)

    data = jax.random.normal(k_data, (B, P, input_size), jnp.float32)
    # init_hidden gives zeros; use small random states to exercise the recurrence.
    h0_k4 = 0.1 * jax.random.normal(k_h, (L, B, P, H), jnp.float32)
    c0_k4 = 0.1 * jax.random.normal(k_c, (L, B, P, H), jnp.float32)

    params = init_lstm_params(k_param, L, input_size, H)

    # Reference in the PyTorch per-pedestrian layout (conversion is test-only,
    # not part of the per-step device path).
    h0_plist = jnp.transpose(h0_k4, (2, 0, 1, 3))          # (P, L, B, H)
    c0_plist = jnp.transpose(c0_k4, (2, 0, 1, 3))
    out_ref, hn_ref, cn_ref = motion_encoder_ref(data, h0_plist, c0_plist, params)

    # Pallas forward: state lives in kernel layout (L, B*P, H), row = b*P + p.
    w_ih0, w_ihr, w_hh, b = pack_params(params, H)
    forward = make_motion_encoder(P, L, input_size, H)
    h0_k = h0_k4.reshape(L, M, H)
    c0_k = c0_k4.reshape(L, M, H)
    output, hn, cn = forward(data, h0_k, c0_k, w_ih0, w_hh, b, w_ihr)
    jax.block_until_ready((output, hn, cn))

    # Convert kernel-layout state back to per-pedestrian layout (test only).
    hn_p = jnp.transpose(hn.reshape(L, B, P, H), (2, 0, 1, 3))
    cn_p = jnp.transpose(cn.reshape(L, B, P, H), (2, 0, 1, 3))

    np.testing.assert_allclose(np.asarray(output), np.asarray(out_ref),
                               atol=1e-3, rtol=1e-3)
    np.testing.assert_allclose(np.asarray(hn_p), np.asarray(hn_ref),
                               atol=1e-3, rtol=1e-3)
    np.testing.assert_allclose(np.asarray(cn_p), np.asarray(cn_ref),
                               atol=1e-3, rtol=1e-3)

    print("KERNEL_OK")
</pallas_src>

<mosaic_0001>
module attributes {stable_mosaic.version = 11 : i64} {
  func.func @motion_encoder_kernel(%arg0: memref<8x16xf32, #tpu.memory_space<vmem>>, %arg1: memref<2x8x32xf32, #tpu.memory_space<vmem>>, %arg2: memref<2x8x32xf32, #tpu.memory_space<vmem>>, %arg3: memref<16x128xf32, #tpu.memory_space<vmem>>, %arg4: memref<1x32x128xf32, #tpu.memory_space<vmem>>, %arg5: memref<2x32x128xf32, #tpu.memory_space<vmem>>, %arg6: memref<2x1x128xf32, #tpu.memory_space<vmem>>, %arg7: memref<2x8x32xf32, #tpu.memory_space<vmem>>, %arg8: memref<2x8x32xf32, #tpu.memory_space<vmem>>) attributes {dimension_semantics = [], scalar_prefetch = 0 : i64, scratch_operands = 0 : i64, tpu.core_type = #tpu.core_type<tc>} {
    %c0 = arith.constant 0 : index
    %c0_0 = arith.constant 0 : index
    %c0_1 = arith.constant 0 : index
    %0 = vector.load %arg1[%c0, %c0_0, %c0_1] : memref<2x8x32xf32, #tpu.memory_space<vmem>>, vector<2x8x32xf32>
    %c0_2 = arith.constant 0 : index
    %c0_3 = arith.constant 0 : index
    %c0_4 = arith.constant 0 : index
    %1 = vector.load %arg2[%c0_2, %c0_3, %c0_4] : memref<2x8x32xf32, #tpu.memory_space<vmem>>, vector<2x8x32xf32>
    %2 = vector.extract_strided_slice %0 {offsets = [0, 0, 0], sizes = [1, 8, 32], strides = [1, 1, 1]} : vector<2x8x32xf32> to vector<1x8x32xf32>
    %3 = vector.shape_cast %2 : vector<1x8x32xf32> to vector<8x32xf32>
    %c0_5 = arith.constant 0 : index
    %c0_6 = arith.constant 0 : index
    %c0_7 = arith.constant 0 : index
    %4 = vector.load %arg5[%c0_5, %c0_6, %c0_7] : memref<2x32x128xf32, #tpu.memory_space<vmem>>, vector<1x32x128xf32>
    %5 = vector.shape_cast %4 : vector<1x32x128xf32> to vector<32x128xf32>
    %cst = arith.constant dense<0.000000e+00> : vector<8x128xf32>
    %6 = tpu.matmul %3, %5, %cst {dimension_numbers = #tpu.dot_dimension_numbers<[1], [0], [0], [1], [0, 0, 1, 1], [], []>} : vector<8x32xf32>, vector<32x128xf32>, vector<8x128xf32> -> vector<8x128xf32>
    %c0_8 = arith.constant 0 : index
    %c0_9 = arith.constant 0 : index
    %c0_10 = arith.constant 0 : index
    %7 = vector.load %arg6[%c0_8, %c0_9, %c0_10] : memref<2x1x128xf32, #tpu.memory_space<vmem>>, vector<1x1x128xf32>
    %8 = vector.shape_cast %7 : vector<1x1x128xf32> to vector<1x128xf32>
    %9 = vector.broadcast %8 : vector<1x128xf32> to vector<8x128xf32>
    %10 = arith.addf %6, %9 : vector<8x128xf32>
    %11 = vector.extract_strided_slice %0 {offsets = [1, 0, 0], sizes = [1, 8, 32], strides = [1, 1, 1]} : vector<2x8x32xf32> to vector<1x8x32xf32>
    %12 = vector.shape_cast %11 : vector<1x8x32xf32> to vector<8x32xf32>
    %c1 = arith.constant 1 : index
    %c0_11 = arith.constant 0 : index
    %c0_12 = arith.constant 0 : index
    %13 = vector.load %arg5[%c1, %c0_11, %c0_12] : memref<2x32x128xf32, #tpu.memory_space<vmem>>, vector<1x32x128xf32>
    %14 = vector.shape_cast %13 : vector<1x32x128xf32> to vector<32x128xf32>
    %cst_13 = arith.constant dense<0.000000e+00> : vector<8x128xf32>
    %15 = tpu.matmul %12, %14, %cst_13 {dimension_numbers = #tpu.dot_dimension_numbers<[1], [0], [0], [1], [0, 0, 1, 1], [], []>} : vector<8x32xf32>, vector<32x128xf32>, vector<8x128xf32> -> vector<8x128xf32>
    %c1_14 = arith.constant 1 : index
    %c0_15 = arith.constant 0 : index
    %c0_16 = arith.constant 0 : index
    %16 = vector.load %arg6[%c1_14, %c0_15, %c0_16] : memref<2x1x128xf32, #tpu.memory_space<vmem>>, vector<1x1x128xf32>
    %17 = vector.shape_cast %16 : vector<1x1x128xf32> to vector<1x128xf32>
    %18 = vector.broadcast %17 : vector<1x128xf32> to vector<8x128xf32>
    %19 = arith.addf %15, %18 : vector<8x128xf32>
    %c0_17 = arith.constant 0 : index
    %c0_18 = arith.constant 0 : index
    %20 = vector.load %arg0[%c0_17, %c0_18] : memref<8x16xf32, #tpu.memory_space<vmem>>, vector<8x16xf32>
    %c0_19 = arith.constant 0 : index
    %c0_20 = arith.constant 0 : index
    %21 = vector.load %arg3[%c0_19, %c0_20] : memref<16x128xf32, #tpu.memory_space<vmem>>, vector<16x128xf32>
    %cst_21 = arith.constant dense<0.000000e+00> : vector<8x128xf32>
    %22 = tpu.matmul %20, %21, %cst_21 {dimension_numbers = #tpu.dot_dimension_numbers<[1], [0], [0], [1], [0, 0, 1, 1], [], []>} : vector<8x16xf32>, vector<16x128xf32>, vector<8x128xf32> -> vector<8x128xf32>
    %23 = arith.addf %22, %10 : vector<8x128xf32>
    %24 = vector.extract_strided_slice %23 {offsets = [0, 0], sizes = [8, 96], strides = [1, 1]} : vector<8x128xf32> to vector<8x96xf32>
    %25 = arith.negf %24 : vector<8x96xf32>
    %26 = math.exp %25 : vector<8x96xf32>
    %cst_22 = arith.constant 1.000000e+00 : f32
    %27 = vector.broadcast %cst_22 : f32 to vector<8x96xf32>
    %28 = arith.addf %27, %26 : vector<8x96xf32>
    %29 = arith.divf %27, %28 : vector<8x96xf32>
    %30 = vector.extract_strided_slice %23 {offsets = [0, 96], sizes = [8, 32], strides = [1, 1]} : vector<8x128xf32> to vector<8x32xf32>
    %31 = math.tanh %30 : vector<8x32xf32>
    %32 = vector.extract_strided_slice %29 {offsets = [0, 0], sizes = [8, 32], strides = [1, 1]} : vector<8x96xf32> to vector<8x32xf32>
    %33 = vector.extract_strided_slice %29 {offsets = [0, 32], sizes = [8, 32], strides = [1, 1]} : vector<8x96xf32> to vector<8x32xf32>
    %34 = vector.extract_strided_slice %29 {offsets = [0, 64], sizes = [8, 32], strides = [1, 1]} : vector<8x96xf32> to vector<8x32xf32>
    %35 = vector.extract_strided_slice %1 {offsets = [0, 0, 0], sizes = [1, 8, 32], strides = [1, 1, 1]} : vector<2x8x32xf32> to vector<1x8x32xf32>
    %36 = vector.shape_cast %35 : vector<1x8x32xf32> to vector<8x32xf32>
    %37 = arith.mulf %33, %36 : vector<8x32xf32>
    %38 = arith.mulf %32, %31 : vector<8x32xf32>
    %39 = arith.addf %37, %38 : vector<8x32xf32>
    %40 = math.tanh %39 : vector<8x32xf32>
    %41 = arith.mulf %34, %40 : vector<8x32xf32>
    %c0_23 = arith.constant 0 : index
    %c0_24 = arith.constant 0 : index
    %c0_25 = arith.constant 0 : index
    %42 = vector.load %arg7[%c0_23, %c0_24, %c0_25] : memref<2x8x32xf32, #tpu.memory_space<vmem>>, vector<1x8x32xf32>
    %43 = vector.shape_cast %42 : vector<1x8x32xf32> to vector<8x32xf32>
    %44 = vector.shape_cast %41 : vector<8x32xf32> to vector<1x8x32xf32>
    tpu.vector_store %arg7[%c0_23, %c0_24, %c0_25], %44 {strides = array<i32>} : memref<2x8x32xf32, #tpu.memory_space<vmem>>, vector<1x8x32xf32>,
    %c0_26 = arith.constant 0 : index
    %c0_27 = arith.constant 0 : index
    %c0_28 = arith.constant 0 : index
    %45 = vector.load %arg8[%c0_26, %c0_27, %c0_28] : memref<2x8x32xf32, #tpu.memory_space<vmem>>, vector<1x8x32xf32>
    %46 = vector.shape_cast %45 : vector<1x8x32xf32> to vector<8x32xf32>
    %47 = vector.shape_cast %39 : vector<8x32xf32> to vector<1x8x32xf32>
    tpu.vector_store %arg8[%c0_26, %c0_27, %c0_28], %47 {strides = array<i32>} : memref<2x8x32xf32, #tpu.memory_space<vmem>>, vector<1x8x32xf32>,
    %c0_29 = arith.constant 0 : index
    %c0_30 = arith.constant 0 : index
    %c0_31 = arith.constant 0 : index
    %48 = vector.load %arg4[%c0_29, %c0_30, %c0_31] : memref<1x32x128xf32, #tpu.memory_space<vmem>>, vector<1x32x128xf32>
    %49 = vector.shape_cast %48 : vector<1x32x128xf32> to vector<32x128xf32>
    %cst_32 = arith.constant dense<0.000000e+00> : vector<8x128xf32>
    %50 = tpu.matmul %41, %49, %cst_32 {dimension_numbers = #tpu.dot_dimension_numbers<[1], [0], [0], [1], [0, 0, 1, 1], [], []>} : vector<8x32xf32>, vector<32x128xf32>, vector<8x128xf32> -> vector<8x128xf32>
    %51 = arith.addf %50, %19 : vector<8x128xf32>
    %52 = vector.extract_strided_slice %51 {offsets = [0, 0], sizes = [8, 96], strides = [1, 1]} : vector<8x128xf32> to vector<8x96xf32>
    %53 = arith.negf %52 : vector<8x96xf32>
    %54 = math.exp %53 : vector<8x96xf32>
    %cst_33 = arith.constant 1.000000e+00 : f32
    %55 = vector.broadcast %cst_33 : f32 to vector<8x96xf32>
    %56 = arith.addf %55, %54 : vector<8x96xf32>
    %57 = arith.divf %55, %56 : vector<8x96xf32>
    %58 = vector.extract_strided_slice %51 {offsets = [0, 96], sizes = [8, 32], strides = [1, 1]} : vector<8x128xf32> to vector<8x32xf32>
    %59 = math.tanh %58 : vector<8x32xf32>
    %60 = vector.extract_strided_slice %57 {offsets = [0, 0], sizes = [8, 32], strides = [1, 1]} : vector<8x96xf32> to vector<8x32xf32>
    %61 = vector.extract_strided_slice %57 {offsets = [0, 32], sizes = [8, 32], strides = [1, 1]} : vector<8x96xf32> to vector<8x32xf32>
    %62 = vector.extract_strided_slice %57 {offsets = [0, 64], sizes = [8, 32], strides = [1, 1]} : vector<8x96xf32> to vector<8x32xf32>
    %63 = vector.extract_strided_slice %1 {offsets = [1, 0, 0], sizes = [1, 8, 32], strides = [1, 1, 1]} : vector<2x8x32xf32> to vector<1x8x32xf32>
    %64 = vector.shape_cast %63 : vector<1x8x32xf32> to vector<8x32xf32>
    %65 = arith.mulf %61, %64 : vector<8x32xf32>
    %66 = arith.mulf %60, %59 : vector<8x32xf32>
    %67 = arith.addf %65, %66 : vector<8x32xf32>
    %68 = math.tanh %67 : vector<8x32xf32>
    %69 = arith.mulf %62, %68 : vector<8x32xf32>
    %c1_34 = arith.constant 1 : index
    %c0_35 = arith.constant 0 : index
    %c0_36 = arith.constant 0 : index
    %70 = vector.load %arg7[%c1_34, %c0_35, %c0_36] : memref<2x8x32xf32, #tpu.memory_space<vmem>>, vector<1x8x32xf32>
    %71 = vector.shape_cast %70 : vector<1x8x32xf32> to vector<8x32xf32>
    %72 = vector.shape_cast %69 : vector<8x32xf32> to vector<1x8x32xf32>
    tpu.vector_store %arg7[%c1_34, %c0_35, %c0_36], %72 {strides = array<i32>} : memref<2x8x32xf32, #tpu.memory_space<vmem>>, vector<1x8x32xf32>,
    %c1_37 = arith.constant 1 : index
    %c0_38 = arith.constant 0 : index
    %c0_39 = arith.constant 0 : index
    %73 = vector.load %arg8[%c1_37, %c0_38, %c0_39] : memref<2x8x32xf32, #tpu.memory_space<vmem>>, vector<1x8x32xf32>
    %74 = vector.shape_cast %73 : vector<1x8x32xf32> to vector<8x32xf32>
    %75 = vector.shape_cast %67 : vector<8x32xf32> to vector<1x8x32xf32>
    tpu.vector_store %arg8[%c1_37, %c0_38, %c0_39], %75 {strides = array<i32>} : memref<2x8x32xf32, #tpu.memory_space<vmem>>, vector<1x8x32xf32>,
    return
  }
}

</mosaic_0001>

<llo_original>
// kernel: forward.1
$region0: #{forward.1}
  #allocation0 [shape = 'u32[]', space=smem, size = 0x4, offset = 0x4, fixed_abs, tag = 'smem constant byte address 0x4 - core index']
  #allocation1 [shape = 'u32[144,128]{1,0:T(1,128)}', space=vmem, size = 0x12000, scoped, tag = 'internal scratch']
  %s0 = inlined_call_operand.hbm [shape: f32[8,16], index: 0, kind: input, shape index: {}]
  %s1 = inlined_call_operand.hbm [shape: f32[2,8,32], index: 1, kind: input, shape index: {}, may-alias: {1,7}]
  %s2 = inlined_call_operand.hbm [shape: f32[2,8,32], index: 2, kind: input, shape index: {}, may-alias: {2,8}]
  %s3 = inlined_call_operand.hbm [shape: f32[16,128], index: 3, kind: input, shape index: {}]
  %s4 = inlined_call_operand.hbm [shape: f32[1,32,128], index: 4, kind: input, shape index: {}]
  %s5 = inlined_call_operand.hbm [shape: f32[2,32,128], index: 5, kind: input, shape index: {}]
  %s6 = inlined_call_operand.vmem [shape: f32[2,1,128], index: 6, kind: input, shape index: {}]
  %s7 = inlined_call_operand.hbm [shape: f32[2,8,32], index: 7, kind: output, shape index: {0}, may-alias: {1,7}]
  %s8 = inlined_call_operand.hbm [shape: f32[2,8,32], index: 8, kind: output, shape index: {1}, may-alias: {2,8}]
  %9 = xla_tuple %s7, %s8
  %s10 = sld [smem:[#allocation0]]
  $region70: #{forward.1} parent=0
    _
  %s12 = ssub.s32 1, %s10
  %s13 = scalar_select 0, %s12, %s10
  $region1: #{forward.1} parent=0
    #allocation2 [shape = 'u8[4096]{0}', space=vmem, size = 0x1000, scoped, tag = 'input window, operand 0, single buffered']
    #allocation3 [shape = 's32[1]{0}', space=sflag, size = 0x4, scoped, tag = 'scoped memory for forward.1']
    #allocation4 [shape = 's32[1]{0}', space=sflag, size = 0x4, scoped, tag = 'scoped memory for forward.1']
    #allocation5 [shape = 'u8[8192]{0}', space=vmem, size = 0x2000, scoped, tag = 'input window, operand 1, single buffered']
    #allocation6 [shape = 's32[1]{0}', space=sflag, size = 0x4, scoped, tag = 'scoped memory for forward.1']
    #allocation7 [shape = 'u8[8192]{0}', space=vmem, size = 0x2000, scoped, tag = 'input window, operand 2, single buffered']
    #allocation8 [shape = 'u8[8192]{0}', space=vmem, size = 0x2000, scoped, tag = 'input window, operand 3, single buffered']
    #allocation9 [shape = 's32[1]{0}', space=sflag, size = 0x4, scoped, tag = 'scoped memory for forward.1']
    #allocation10 [shape = 'u8[16384]{0}', space=vmem, size = 0x4000, scoped, tag = 'input window, operand 4, single buffered']
    #allocation11 [shape = 'u8[32768]{0}', space=vmem, size = 0x8000, scoped, tag = 'input window, operand 5, single buffered']
    #allocation12 [shape = 's32[1]{0}', space=sflag, size = 0x4, scoped, tag = 'scoped memory for forward.1']
    #allocation13 [shape = 'u8[8192]{0}', space=vmem, size = 0x2000, scoped, tag = 'output window, operand 0, single buffered']
    #allocation14 [shape = 'u8[8192]{0}', space=vmem, size = 0x2000, scoped, tag = 'output window, operand 1, single buffered']
    #allocation15 [shape = 's32[1]{0}', space=sflag, size = 0x4, scoped, tag = 'scoped memory for forward.1']
    %14 = vsyncpa [#allocation3], 0
    %15 = vsyncpa [#allocation6], 0
    %16 = vsyncpa [#allocation9], 0
    %17 = vsyncpa [#allocation12], 0
    %18 = vsyncpa [#allocation4], 0
    %19 = vsyncpa [#allocation15], 0
    // Predicated region
    $region2: #{forward.1} parent=1 // pred_check
      _
    $region3: #{forward.1} parent=1 // pred_check_branch
      %21 = sbr.rel (0) target = $region5
    $region4: #{forward.1} parent=1 // pred_region
      %s23 = ssub.s32 128, 128
      %24 = vsyncadd [#allocation3], %s23
      %s26 = sshll.u32 [#allocation2], 4
      %s27 = int_to_ptr.vmem [resolvable:$true] %s26
      %29 = dma.hbm_to_vmem [thread:$0]  %s0, 128, %s27, [#allocation3]
    $region5: #{forward.1} parent=1 // pred_fallthru
      _
    // Predicated region
    $region6: #{forward.1} parent=1 // pred_check
      _
    $region7: #{forward.1} parent=1 // pred_check_branch
      %31 = sbr.rel (0) target = $region9
    $region8: #{forward.1} parent=1 // pred_region
      %s33 = ssub.s32 256, 256
      %34 = vsyncadd [#allocation6], %s33
      %s35 = sshll.u32 [#allocation5], 4
      %s36 = int_to_ptr.vmem [resolvable:$true] %s35
      %41 = dma.hbm_to_vmem [thread:$0]  %s1, 256, %s36, [#allocation6], 128, 128, 8
    $region9: #{forward.1} parent=1 // pred_fallthru
      _
    // Predicated region
    $region10: #{forward.1} parent=1 // pred_check
      _
    $region11: #{forward.1} parent=1 // pred_check_branch
      %43 = sbr.rel (0) target = $region13
    $region12: #{forward.1} parent=1 // pred_region
      %s45 = ssub.s32 256, 256
      %46 = vsyncadd [#allocation6], %s45
      %s47 = sshll.u32 [#allocation7], 4
      %s48 = int_to_ptr.vmem [resolvable:$true] %s47
      %53 = dma.hbm_to_vmem [thread:$0]  %s2, 256, %s48, [#allocation6], 128, 128, 8
    $region13: #{forward.1} parent=1 // pred_fallthru
      _
    // Predicated region
    $region14: #{forward.1} parent=1 // pred_check
      _
    $region15: #{forward.1} parent=1 // pred_check_branch
      %55 = sbr.rel (0) target = $region17
    $region16: #{forward.1} parent=1 // pred_region
      %s57 = ssub.s32 256, 256
      %58 = vsyncadd [#allocation9], %s57
      %s59 = sshll.u32 [#allocation8], 4
      %s60 = int_to_ptr.vmem [resolvable:$true] %s59
      %65 = dma.hbm_to_vmem [thread:$0]  %s3, 256, %s60, [#allocation9], 128, 128, 8
    $region17: #{forward.1} parent=1 // pred_fallthru
      _
    // Predicated region
    $region18: #{forward.1} parent=1 // pred_check
      _
    $region19: #{forward.1} parent=1 // pred_check_branch
      %67 = sbr.rel (0) target = $region21
    $region20: #{forward.1} parent=1 // pred_region
      %s69 = ssub.s32 512, 512
      %70 = vsyncadd [#allocation9], %s69
      %s71 = sshll.u32 [#allocation10], 4
      %s72 = int_to_ptr.vmem [resolvable:$true] %s71
      %77 = dma.hbm_to_vmem [thread:$0]  %s4, 512, %s72, [#allocation9], 128, 128, 8
    $region21: #{forward.1} parent=1 // pred_fallthru
      _
    // Predicated region
    $region22: #{forward.1} parent=1 // pred_check
      _
    $region23: #{forward.1} parent=1 // pred_check_branch
      %79 = sbr.rel (0) target = $region25
    $region24: #{forward.1} parent=1 // pred_region
      %s81 = ssub.s32 1024, 1024
      %82 = vsyncadd [#allocation12], %s81
      %s83 = sshll.u32 [#allocation11], 4
      %s84 = int_to_ptr.vmem [resolvable:$true] %s83
      %89 = dma.hbm_to_vmem [thread:$0]  %s5, 1024, %s84, [#allocation12], 128, 128, 8
    $region25: #{forward.1} parent=1 // pred_fallthru
      _
    // Predicated region
    $region26: #{forward.1} parent=1 // pred_check
      _
    $region27: #{forward.1} parent=1 // pred_check_branch
      %91 = sbr.rel (0) target = $region29
    $region28: #{forward.1} parent=1 // pred_region
      _
    $region29: #{forward.1} parent=1 // pred_fallthru
      _
    // Predicated region
    $region30: #{forward.1} parent=1 // pred_check
      _
    $region31: #{forward.1} parent=1 // pred_check_branch
      %93 = sbr.rel (0) target = $region33
    $region32: #{forward.1} parent=1 // pred_region
      %94 = dma.done [#allocation3], 128
    $region33: #{forward.1} parent=1 // pred_fallthru
      _
    // Predicated region
    $region34: #{forward.1} parent=1 // pred_check
      _
    $region35: #{forward.1} parent=1 // pred_check_branch
      %96 = sbr.rel (0) target = $region37
    $region36: #{forward.1} parent=1 // pred_region
      %97 = dma.done [#allocation6], 256
    $region37: #{forward.1} parent=1 // pred_fallthru
      _
    // Predicated region
    $region38: #{forward.1} parent=1 // pred_check
      _
    $region39: #{forward.1} parent=1 // pred_check_branch
      %99 = sbr.rel (0) target = $region41
    $region40: #{forward.1} parent=1 // pred_region
      %100 = dma.done [#allocation6], 256
    $region41: #{forward.1} parent=1 // pred_fallthru
      _
    // Predicated region
    $region42: #{forward.1} parent=1 // pred_check
      _
    $region43: #{forward.1} parent=1 // pred_check_branch
      %102 = sbr.rel (0) target = $region45
    $region44: #{forward.1} parent=1 // pred_region
      %103 = dma.done [#allocation9], 256
    $region45: #{forward.1} parent=1 // pred_fallthru
      _
    // Predicated region
    $region46: #{forward.1} parent=1 // pred_check
      _
    $region47: #{forward.1} parent=1 // pred_check_branch
      %105 = sbr.rel (0) target = $region49
    $region48: #{forward.1} parent=1 // pred_region
      %106 = dma.done [#allocation9], 512
    $region49: #{forward.1} parent=1 // pred_fallthru
      _
    // Predicated region
    $region50: #{forward.1} parent=1 // pred_check
      _
    $region51: #{forward.1} parent=1 // pred_check_branch
      %108 = sbr.rel (0) target = $region53
    $region52: #{forward.1} parent=1 // pred_region
      %109 = dma.done [#allocation12], 1024
    $region53: #{forward.1} parent=1 // pred_fallthru
      _
    %v110 = vld [vmem:[#allocation5] sm:$0xff]
    %v111 = vld [vmem:[#allocation5 + $0x8] sm:$0xff]
    %v112 = vld [vmem:[#allocation7] sm:$0xff]
    %v113 = vld [vmem:[#allocation7 + $0x8] sm:$0xff]
    %v114 = vld [vmem:[#allocation11] sm:$0xff]
    %v115 = vld [vmem:[#allocation11 + $0x8] sm:$0xff]
    %v116 = vld [vmem:[#allocation11 + $0x10] sm:$0xff]
    %v117 = vld [vmem:[#allocation11 + $0x18] sm:$0xff]
    %v118 = vld [vmem:[%s6] sm:$0x1]
    %v120 = vlaneseq
    %v121 = vshrl.u32 %v120, 7
    %v122 = vsub.s32 0, %v121
    %v123 = vrot.slane %v118, %v122
    %vm125 = vcmask 261120
    %v127 = vsel %vm125, %v110, 0
    %129 = vmatprep.subr.mxu0 0.0
    %130 = vmatpush1.msra.mxu0 0.0
    %131 = vmatprep.subr.mxu0 0.0
    %132 = vmatpush1.msra.mxu0 0.0
    %133 = vmatprep.subr.mxu0 0.0
    %134 = vmatpush1.msra.mxu0 0.0
    %135 = vmatprep.subr.mxu0 0.0
    %136 = vmatpush1.msra.mxu0 0.0
    %137 = vmatprep.subr.mxu0 0.0
    %138 = vmatpush1.msra.mxu0 0.0
    %139 = vmatprep.subr.mxu0 0.0
    %140 = vmatpush1.msra.mxu0 0.0
    %141 = vmatprep.subr.mxu0 0.0
    %142 = vmatpush1.msra.mxu0 0.0
    %143 = vmatprep.subr.mxu0 0.0
    %144 = vmatpush1.msra.mxu0 0.0
    %145 = vmatprep.subr.mxu0 0.0
    %146 = vmatpush1.msra.mxu0 0.0
    %147 = vmatprep.subr.mxu0 0.0
    %148 = vmatpush1.msra.mxu0 0.0
    %149 = vmatprep.subr.mxu0 0.0
    %150 = vmatpush1.msra.mxu0 0.0
    %151 = vmatprep.subr.mxu0 0.0
    %152 = vmatpush1.msra.mxu0 0.0
    %153 = vmatprep.subr.mxu0 0.0
    %154 = vmatpush1.msra.mxu0 %v117
    %155 = vmatprep.subr.mxu0 0.0
    %156 = vmatpush1.msra.mxu0 %v116
    %157 = vmatprep.subr.mxu0 0.0
    %158 = vmatpush1.msra.mxu0 %v115
    %159 = vmatprep.subr.mxu0 0.0
    %160 = vmatpush1.msra.mxu0 %v114
    %161 = vmatprep.subr.mxu0 0.0
    %162 = vmatpush2.msra.mxu0 0.0
    %163 = vmatprep.subr.mxu0 0.0
    %164 = vmatpush2.msra.mxu0 0.0
    %165 = vmatprep.subr.mxu0 0.0
    %166 = vmatpush2.msra.mxu0 0.0
    %167 = vmatprep.subr.mxu0 0.0
    %168 = vmatpush2.msra.mxu0 0.0
    %169 = vmatprep.subr.mxu0 0.0
    %170 = vmatpush2.msra.mxu0 0.0
    %171 = vmatprep.subr.mxu0 0.0
    %172 = vmatpush2.msra.mxu0 0.0
    %173 = vmatprep.subr.mxu0 0.0
    %174 = vmatpush2.msra.mxu0 0.0
    %175 = vmatprep.subr.mxu0 0.0
    %176 = vmatpush2.msra.mxu0 0.0
    %177 = vmatprep.subr.mxu0 0.0
    %178 = vmatpush2.msra.mxu0 0.0
    %179 = vmatprep.subr.mxu0 0.0
    %180 = vmatpush2.msra.mxu0 0.0
    %181 = vmatprep.subr.mxu0 0.0
    %182 = vmatpush2.msra.mxu0 0.0
    %183 = vmatprep.subr.mxu0 0.0
    %184 = vmatpush2.msra.mxu0 0.0
    %185 = vmatprep.subr.mxu0 0.0
    %186 = vmatpush2.msra.mxu0 0.0
    %187 = vmatprep.subr.mxu0 0.0
    %188 = vmatpush2.msra.mxu0 0.0
    %189 = vmatprep.subr.mxu0 0.0
    %190 = vmatpush2.msra.mxu0 0.0
    %191 = vmatprep.subr.mxu0 0.0
    %192 = vmatpush2.msra.mxu0 0.0
    %193 = vmatprep.mubr.f32.mxu0 0.0
    %194 = vmatmul.mubr.f32.gmra.mxu0 %v127
    %v195 = vpop.f32.mrf.mxu0
    %v196 = vadd.f32 %v123, %v195
    %v197 = vpop.f32.mrf.mxu0
    %198 = vdwg.mxu0
    %s199 = scalar_lea.vmem [#allocation11], 32
    %v200 = vld [vmem:[%s199] sm:$0xff]
    %v201 = vld [vmem:[%s199 + $0x8] sm:$0xff]
    %v202 = vld [vmem:[%s199 + $0x10] sm:$0xff]
    %v203 = vld [vmem:[%s199 + $0x18] sm:$0xff]
    %s204 = scalar_lea.vmem %s6, 1
    %v205 = vld [vmem:[%s204] sm:$0x1]
    %v207 = vlaneseq
    %v208 = vshrl.u32 %v207, 7
    %v209 = vsub.s32 0, %v208
    %v210 = vrot.slane %v205, %v209
    %v213 = vsel %vm125, %v111, 0
    %215 = vmatprep.subr.mxu0 0.0
    %216 = vmatpush1.msra.mxu0 0.0
    %217 = vmatprep.subr.mxu0 0.0
    %218 = vmatpush1.msra.mxu0 0.0
    %219 = vmatprep.subr.mxu0 0.0
    %220 = vmatpush1.msra.mxu0 0.0
    %221 = vmatprep.subr.mxu0 0.0
    %222 = vmatpush1.msra.mxu0 0.0
    %223 = vmatprep.subr.mxu0 0.0
    %224 = vmatpush1.msra.mxu0 0.0
    %225 = vmatprep.subr.mxu0 0.0
    %226 = vmatpush1.msra.mxu0 0.0
    %227 = vmatprep.subr.mxu0 0.0
    %228 = vmatpush1.msra.mxu0 0.0
    %229 = vmatprep.subr.mxu0 0.0
    %230 = vmatpush1.msra.mxu0 0.0
    %231 = vmatprep.subr.mxu0 0.0
    %232 = vmatpush1.msra.mxu0 0.0
    %233 = vmatprep.subr.mxu0 0.0
    %234 = vmatpush1.msra.mxu0 0.0
    %235 = vmatprep.subr.mxu0 0.0
    %236 = vmatpush1.msra.mxu0 0.0
    %237 = vmatprep.subr.mxu0 0.0
    %238 = vmatpush1.msra.mxu0 0.0
    %239 = vmatprep.subr.mxu0 0.0
    %240 = vmatpush1.msra.mxu0 %v203
    %241 = vmatprep.subr.mxu0 0.0
    %242 = vmatpush1.msra.mxu0 %v202
    %243 = vmatprep.subr.mxu0 0.0
    %244 = vmatpush1.msra.mxu0 %v201
    %245 = vmatprep.subr.mxu0 0.0
    %246 = vmatpush1.msra.mxu0 %v200
    %247 = vmatprep.subr.mxu0 0.0
    %248 = vmatpush2.msra.mxu0 0.0
    %249 = vmatprep.subr.mxu0 0.0
    %250 = vmatpush2.msra.mxu0 0.0
    %251 = vmatprep.subr.mxu0 0.0
    %252 = vmatpush2.msra.mxu0 0.0
    %253 = vmatprep.subr.mxu0 0.0
    %254 = vmatpush2.msra.mxu0 0.0
    %255 = vmatprep.subr.mxu0 0.0
    %256 = vmatpush2.msra.mxu0 0.0
    %257 = vmatprep.subr.mxu0 0.0
    %258 = vmatpush2.msra.mxu0 0.0
    %259 = vmatprep.subr.mxu0 0.0
    %260 = vmatpush2.msra.mxu0 0.0
    %261 = vmatprep.subr.mxu0 0.0
    %262 = vmatpush2.msra.mxu0 0.0
    %263 = vmatprep.subr.mxu0 0.0
    %264 = vmatpush2.msra.mxu0 0.0
    %265 = vmatprep.subr.mxu0 0.0
    %266 = vmatpush2.msra.mxu0 0.0
    %267 = vmatprep.subr.mxu0 0.0
    %268 = vmatpush2.msra.mxu0 0.0
    %269 = vmatprep.subr.mxu0 0.0
    %270 = vmatpush2.msra.mxu0 0.0
    %271 = vmatprep.subr.mxu0 0.0
    %272 = vmatpush2.msra.mxu0 0.0
    %273 = vmatprep.subr.mxu0 0.0
    %274 = vmatpush2.msra.mxu0 0.0
    %275 = vmatprep.subr.mxu0 0.0
    %276 = vmatpush2.msra.mxu0 0.0
    %277 = vmatprep.subr.mxu0 0.0
    %278 = vmatpush2.msra.mxu0 0.0
    %279 = vmatprep.mubr.f32.mxu0 0.0
    %280 = vmatmul.mubr.f32.gmra.mxu0 %v213
    %v281 = vpop.f32.mrf.mxu0
    %v282 = vadd.f32 %v210, %v281
    %v283 = vpop.f32.mrf.mxu0
    %284 = vdwg.mxu0
    %v285 = vld [vmem:[#allocation2] sm:$0xff]
    %v286 = vld [vmem:[#allocation8] sm:$0xff]
    %v287 = vld [vmem:[#allocation8 + $0x8] sm:$0xff]
    %vm288 = vcmask 130048
    %v290 = vsel %vm288, %v285, 0
    %292 = vmatprep.subr.mxu0 0.0
    %293 = vmatpush1.msra.mxu0 0.0
    %294 = vmatprep.subr.mxu0 0.0
    %295 = vmatpush1.msra.mxu0 0.0
    %296 = vmatprep.subr.mxu0 0.0
    %297 = vmatpush1.msra.mxu0 0.0
    %298 = vmatprep.subr.mxu0 0.0
    %299 = vmatpush1.msra.mxu0 0.0
    %300 = vmatprep.subr.mxu0 0.0
    %301 = vmatpush1.msra.mxu0 0.0
    %302 = vmatprep.subr.mxu0 0.0
    %303 = vmatpush1.msra.mxu0 0.0
    %304 = vmatprep.subr.mxu0 0.0
    %305 = vmatpush1.msra.mxu0 0.0
    %306 = vmatprep.subr.mxu0 0.0
    %307 = vmatpush1.msra.mxu0 0.0
    %308 = vmatprep.subr.mxu0 0.0
    %309 = vmatpush1.msra.mxu0 0.0
    %310 = vmatprep.subr.mxu0 0.0
    %311 = vmatpush1.msra.mxu0 0.0
    %312 = vmatprep.subr.mxu0 0.0
    %313 = vmatpush1.msra.mxu0 0.0
    %314 = vmatprep.subr.mxu0 0.0
    %315 = vmatpush1.msra.mxu0 0.0
    %316 = vmatprep.subr.mxu0 0.0
    %317 = vmatpush1.msra.mxu0 0.0
    %318 = vmatprep.subr.mxu0 0.0
    %319 = vmatpush1.msra.mxu0 0.0
    %320 = vmatprep.subr.mxu0 0.0
    %321 = vmatpush1.msra.mxu0 %v287
    %322 = vmatprep.subr.mxu0 0.0
    %323 = vmatpush1.msra.mxu0 %v286
    %324 = vmatprep.subr.mxu0 0.0
    %325 = vmatpush2.msra.mxu0 0.0
    %326 = vmatprep.subr.mxu0 0.0
    %327 = vmatpush2.msra.mxu0 0.0
    %328 = vmatprep.subr.mxu0 0.0
    %329 = vmatpush2.msra.mxu0 0.0
    %330 = vmatprep.subr.mxu0 0.0
    %331 = vmatpush2.msra.mxu0 0.0
    %332 = vmatprep.subr.mxu0 0.0
    %333 = vmatpush2.msra.mxu0 0.0
    %334 = vmatprep.subr.mxu0 0.0
    %335 = vmatpush2.msra.mxu0 0.0
    %336 = vmatprep.subr.mxu0 0.0
    %337 = vmatpush2.msra.mxu0 0.0
    %338 = vmatprep.subr.mxu0 0.0
    %339 = vmatpush2.msra.mxu0 0.0
    %340 = vmatprep.subr.mxu0 0.0
    %341 = vmatpush2.msra.mxu0 0.0
    %342 = vmatprep.subr.mxu0 0.0
    %343 = vmatpush2.msra.mxu0 0.0
    %344 = vmatprep.subr.mxu0 0.0
    %345 = vmatpush2.msra.mxu0 0.0
    %346 = vmatprep.subr.mxu0 0.0
    %347 = vmatpush2.msra.mxu0 0.0
    %348 = vmatprep.subr.mxu0 0.0
    %349 = vmatpush2.msra.mxu0 0.0
    %350 = vmatprep.subr.mxu0 0.0
    %351 = vmatpush2.msra.mxu0 0.0
    %352 = vmatprep.subr.mxu0 0.0
    %353 = vmatpush2.msra.mxu0 0.0
    %354 = vmatprep.subr.mxu0 0.0
    %355 = vmatpush2.msra.mxu0 0.0
    %356 = vmatprep.mubr.f32.mxu0 0.0
    %357 = vmatmul.mubr.f32.gmra.mxu0 %v290
    %v358 = vpop.f32.mrf.mxu0
    %v359 = vadd.f32 %v196, %v358
    %v360 = vpop.f32.mrf.mxu0
    %361 = vdwg.mxu0
    %v362 = vxor.u32 %v359, 2147483648
    %v363 = vmul.f32 %v362, 1.442695
    %v364 = vpow.pop %v363
    %v365 = vadd.f32 %v364, 1.0
    %v366 = vrcp.pop %v365
    %v367 = vmul.f32 1.0, %v366
    %v368 = vtanh.pop %v359
    %370 = vrot.lane.b32.xlu0 %v112, 32
    %v371 = vpop.permute.xlu0 %370
    %v373 = vmul.f32 %v367, %v371
    %375 = vrot.lane.b32.xlu0 %v368, 32
    %v376 = vpop.permute.xlu0 %375
    %v378 = vmul.f32 %v367, %v376
    %380 = vrot.lane.b32.xlu0 %v378, 32
    %v381 = vpop.permute.xlu0 %380
    %v383 = vadd.f32 %v373, %v381
    %v384 = vtanh.pop %v383
    %386 = vrot.lane.b32.xlu0 %v384, 32
    %v387 = vpop.permute.xlu0 %386
    %v389 = vmul.f32 %v367, %v387
    %391 = vrot.lane.b32.xlu0 %v389, 64
    %v392 = vpop.permute.xlu0 %391
    %394 = vst.msk [vmem:[#allocation13] sm:$0xff] %vm125, %v392
    %396 = vrot.lane.b32.xlu0 %v383, 96
    %v397 = vpop.permute.xlu0 %396
    %399 = vst.msk [vmem:[#allocation14] sm:$0xff] %vm125, %v397
    %v400 = vld [vmem:[#allocation10] sm:$0xff]
    %v401 = vld [vmem:[#allocation10 + $0x8] sm:$0xff]
    %v402 = vld [vmem:[#allocation10 + $0x10] sm:$0xff]
    %v403 = vld [vmem:[#allocation10 + $0x18] sm:$0xff]
    %v404 = vsel %vm125, %v392, 0
    %406 = vmatprep.subr.mxu0 0.0
    %407 = vmatpush1.msra.mxu0 0.0
    %408 = vmatprep.subr.mxu0 0.0
    %409 = vmatpush1.msra.mxu0 0.0
    %410 = vmatprep.subr.mxu0 0.0
    %411 = vmatpush1.msra.mxu0 0.0
    %412 = vmatprep.subr.mxu0 0.0
    %413 = vmatpush1.msra.mxu0 0.0
    %414 = vmatprep.subr.mxu0 0.0
    %415 = vmatpush1.msra.mxu0 0.0
    %416 = vmatprep.subr.mxu0 0.0
    %417 = vmatpush1.msra.mxu0 0.0
    %418 = vmatprep.subr.mxu0 0.0
    %419 = vmatpush1.msra.mxu0 0.0
    %420 = vmatprep.subr.mxu0 0.0
    %421 = vmatpush1.msra.mxu0 0.0
    %422 = vmatprep.subr.mxu0 0.0
    %423 = vmatpush1.msra.mxu0 0.0
    %424 = vmatprep.subr.mxu0 0.0
    %425 = vmatpush1.msra.mxu0 0.0
    %426 = vmatprep.subr.mxu0 0.0
    %427 = vmatpush1.msra.mxu0 0.0
    %428 = vmatprep.subr.mxu0 0.0
    %429 = vmatpush1.msra.mxu0 0.0
    %430 = vmatprep.subr.mxu0 0.0
    %431 = vmatpush1.msra.mxu0 %v403
    %432 = vmatprep.subr.mxu0 0.0
    %433 = vmatpush1.msra.mxu0 %v402
    %434 = vmatprep.subr.mxu0 0.0
    %435 = vmatpush1.msra.mxu0 %v401
    %436 = vmatprep.subr.mxu0 0.0
    %437 = vmatpush1.msra.mxu0 %v400
    %438 = vmatprep.subr.mxu0 0.0
    %439 = vmatpush2.msra.mxu0 0.0
    %440 = vmatprep.subr.mxu0 0.0
    %441 = vmatpush2.msra.mxu0 0.0
    %442 = vmatprep.subr.mxu0 0.0
    %443 = vmatpush2.msra.mxu0 0.0
    %444 = vmatprep.subr.mxu0 0.0
    %445 = vmatpush2.msra.mxu0 0.0
    %446 = vmatprep.subr.mxu0 0.0
    %447 = vmatpush2.msra.mxu0 0.0
    %448 = vmatprep.subr.mxu0 0.0
    %449 = vmatpush2.msra.mxu0 0.0
    %450 = vmatprep.subr.mxu0 0.0
    %451 = vmatpush2.msra.mxu0 0.0
    %452 = vmatprep.subr.mxu0 0.0
    %453 = vmatpush2.msra.mxu0 0.0
    %454 = vmatprep.subr.mxu0 0.0
    %455 = vmatpush2.msra.mxu0 0.0
    %456 = vmatprep.subr.mxu0 0.0
    %457 = vmatpush2.msra.mxu0 0.0
    %458 = vmatprep.subr.mxu0 0.0
    %459 = vmatpush2.msra.mxu0 0.0
    %460 = vmatprep.subr.mxu0 0.0
    %461 = vmatpush2.msra.mxu0 0.0
    %462 = vmatprep.subr.mxu0 0.0
    %463 = vmatpush2.msra.mxu0 0.0
    %464 = vmatprep.subr.mxu0 0.0
    %465 = vmatpush2.msra.mxu0 0.0
    %466 = vmatprep.subr.mxu0 0.0
    %467 = vmatpush2.msra.mxu0 0.0
    %468 = vmatprep.subr.mxu0 0.0
    %469 = vmatpush2.msra.mxu0 0.0
    %470 = vmatprep.mubr.f32.mxu0 0.0
    %471 = vmatmul.mubr.f32.gmra.mxu0 %v404
    %v472 = vpop.f32.mrf.mxu0
    %v473 = vadd.f32 %v282, %v472
    %v474 = vpop.f32.mrf.mxu0
    %475 = vdwg.mxu0
    %v476 = vxor.u32 %v473, 2147483648
    %v477 = vmul.f32 %v476, 1.442695
    %v478 = vpow.pop %v477
    %v479 = vadd.f32 %v478, 1.0
    %v480 = vrcp.pop %v479
    %v481 = vmul.f32 1.0, %v480
    %v482 = vtanh.pop %v473
    %484 = vrot.lane.b32.xlu0 %v113, 32
    %v485 = vpop.permute.xlu0 %484
    %v487 = vmul.f32 %v481, %v485
    %489 = vrot.lane.b32.xlu0 %v482, 32
    %v490 = vpop.permute.xlu0 %489
    %v492 = vmul.f32 %v481, %v490
    %494 = vrot.lane.b32.xlu0 %v492, 32
    %v495 = vpop.permute.xlu0 %494
    %v497 = vadd.f32 %v487, %v495
    %v498 = vtanh.pop %v497
    %500 = vrot.lane.b32.xlu0 %v498, 32
    %v501 = vpop.permute.xlu0 %500
    %v503 = vmul.f32 %v481, %v501
    %505 = vrot.lane.b32.xlu0 %v503, 64
    %v506 = vpop.permute.xlu0 %505
    %s508 = scalar_lea.vmem [#allocation13], 8
    %509 = vst.msk [vmem:[%s508] sm:$0xff] %vm125, %v506
    %511 = vrot.lane.b32.xlu0 %v497, 96
    %v512 = vpop.permute.xlu0 %511
    %s514 = scalar_lea.vmem [#allocation14], 8
    %515 = vst.msk [vmem:[%s514] sm:$0xff] %vm125, %v512
    // Predicated region
    $region54: #{forward.1} parent=1 // pred_check
      _
    $region55: #{forward.1} parent=1 // pred_check_branch
      %517 = sbr.rel (0) target = $region57
    $region56: #{forward.1} parent=1 // pred_region
      %s519 = ssub.s32 256, 256
      %520 = vsyncadd [#allocation4], %s519
      %s521 = sshll.u32 [#allocation13], 4
      %s522 = int_to_ptr.vmem [resolvable:$true] %s521
      %527 = dma.vmem_to_hbm [thread:$0]  %s522, 256, %s7, [#allocation4], 128, 128, 8
    $region57: #{forward.1} parent=1 // pred_fallthru
      _
    // Predicated region
    $region58: #{forward.1} parent=1 // pred_check
      _
    $region59: #{forward.1} parent=1 // pred_check_branch
      %529 = sbr.rel (0) target = $region61
    $region60: #{forward.1} parent=1 // pred_region
      %s531 = ssub.s32 256, 256
      %532 = vsyncadd [#allocation15], %s531
      %s533 = sshll.u32 [#allocation14], 4
      %s534 = int_to_ptr.vmem [resolvable:$true] %s533
      %539 = dma.vmem_to_hbm [thread:$0]  %s534, 256, %s8, [#allocation15], 128, 128, 8
    $region61: #{forward.1} parent=1 // pred_fallthru
      _
    // Predicated region
    $region62: #{forward.1} parent=1 // pred_check
      _
    $region63: #{forward.1} parent=1 // pred_check_branch
      %541 = sbr.rel (0) target = $region65
    $region64: #{forward.1} parent=1 // pred_region
      %542 = dma.done [#allocation4], 256
    $region65: #{forward.1} parent=1 // pred_fallthru
      _
    // Predicated region
    $region66: #{forward.1} parent=1 // pred_check
      _
    $region67: #{forward.1} parent=1 // pred_check_branch
      %544 = sbr.rel (0) target = $region69
    $region68: #{forward.1} parent=1 // pred_region
      %545 = dma.done [#allocation15], 256
    $region69: #{forward.1} parent=1 // pred_fallthru
      _
    %546 = vsyncpa [#allocation3], 1
    %547 = vsyncpa [#allocation6], 1
    %548 = vsyncpa [#allocation9], 1
    %549 = vsyncpa [#allocation12], 1
    %550 = vsyncpa [#allocation4], 1
    %551 = vsyncpa [#allocation15], 1

</llo_original>
